<compile_context>
chip_gen: v6e
topology: v6e:2x2x1
jax: 0.10.0
libtpu: 0.0.40
codegen_flags: <defaults>
</compile_context>

<pallas_src>
import functools

import jax
import jax.numpy as jnp
from jax import lax
from jax.experimental import pallas as pl
from jax.experimental.pallas import tpu as pltpu

EPS = 1e-5
NEG_SLOPE = 0.01

# (output parity, tap offset + 1) -> kernel index, for K=4, S=2, P=1 (same table for h and w):
#   parity 0 (even outputs): kh=1 at offset  0, kh=3 at offset -1
#   parity 1 (odd  outputs): kh=2 at offset  0, kh=0 at offset +1
_K_OF = {(0, 0): 3, (0, 1): 1, (1, 1): 2, (1, 2): 0}


def _upsampling_kernel(p_ref, w_ref, g_ref, b_ref, o_ref, *, cout, hw):
    # p_ref: (1, 9*Cin, HW)   w_ref: (4*Cout, 9*Cin)   g/b: (4*Cout, 1)   o_ref: (1, 4*Cout, HW)
    p = p_ref[0]                                                        # (9*Cin, HW)
    # lane-dense matmul: output spatial axis on lanes
    y = jnp.dot(w_ref[...], p, preferred_element_type=jnp.float32)     # (4*Cout, HW)

    inv_count = 1.0 / (4.0 * hw)
    # per-(sample, channel) mean over all 4 parity planes x HW pixels (rows ordered (parity, co))
    rsum = jnp.sum(y, axis=1, keepdims=True)                           # (4*Cout, 1)
    csum = (rsum[0:cout] + rsum[cout:2 * cout]
            + rsum[2 * cout:3 * cout] + rsum[3 * cout:4 * cout])       # (Cout, 1)
    mean = jnp.concatenate([csum] * 4, axis=0) * inv_count             # (4*Cout, 1)

    d = y - mean
    dsq = jnp.sum(d * d, axis=1, keepdims=True)                        # (4*Cout, 1)
    cvar = (dsq[0:cout] + dsq[cout:2 * cout]
            + dsq[2 * cout:3 * cout] + dsq[3 * cout:4 * cout])         # (Cout, 1)
    var = jnp.concatenate([cvar] * 4, axis=0) * inv_count              # biased variance
    inv = lax.rsqrt(var + EPS)                                         # EUP slot

    yn = d * (inv * g_ref[...]) + b_ref[...]
    o_ref[0] = jnp.where(yn > 0, yn, NEG_SLOPE * yn)                   # LeakyReLU(0.01)


def _build_patches(x):
    """x: (N, Cin, H, W) -> (N, 9*Cin, H*W); row index = (3*(dh+1)+(dw+1))*Cin + ci."""
    N, Cin, H, W = x.shape
    xp = jnp.pad(x, ((0, 0), (0, 0), (1, 1), (1, 1)))
    slabs = [xp[:, :, dhi:dhi + H, dwi:dwi + W]
             for dhi in range(3) for dwi in range(3)]                  # each (N, Cin, H, W)
    pat = jnp.stack(slabs, axis=1)                                     # (N, 9, Cin, H, W)
    return pat.reshape(N, 9 * Cin, H * W)


def _build_subpixel_weight(weight):
    """weight: (Cin, Cout, 4, 4) ConvTranspose2d layout -> (4*Cout, 9*Cin).
    Row = (2*ph + pw)*Cout + co, column = (3*(dh+1)+(dw+1))*Cin + ci."""
    Cin, Cout = weight.shape[0], weight.shape[1]
    w = weight.astype(jnp.float32)
    wsub = jnp.zeros((4 * Cout, 9 * Cin), jnp.float32)
    for ph in range(2):
        for pw in range(2):
            p = 2 * ph + pw
            for dhi in range(3):
                for dwi in range(3):
                    if (ph, dhi) in _K_OF and (pw, dwi) in _K_OF:
                        kh, kw = _K_OF[(ph, dhi)], _K_OF[(pw, dwi)]
                        off = 3 * dhi + dwi
                        wsub = wsub.at[p * Cout:(p + 1) * Cout,
                                       off * Cin:(off + 1) * Cin].set(w[:, :, kh, kw].T)
    return wsub


def upsampling_block(x, weight, bias, gamma, beta):
    """x: (N, Cin, H, W) NCHW.  weight: (Cin, Cout, 4, 4) (ConvTranspose2d layout).
    Returns (N, Cout, 2H, 2W) NCHW, matching the PyTorch module.

    NOTE: `bias` is accepted for API parity but never added — InstanceNorm's per-channel
    mean subtraction cancels a per-channel bias exactly, so adding it is dead work."""
    del bias
    N, Cin, H, W = x.shape
    Cout = weight.shape[1]
    HW = H * W
    CK = 9 * Cin

    patches = _build_patches(x.astype(jnp.float32))                    # (N, 9*Cin, HW)
    wsub = _build_subpixel_weight(weight)                              # (4*Cout, 9*Cin)
    g_rows = jnp.tile(gamma.astype(jnp.float32), 4).reshape(4 * Cout, 1)
    b_rows = jnp.tile(beta.astype(jnp.float32), 4).reshape(4 * Cout, 1)

    kernel = functools.partial(_upsampling_kernel, cout=Cout, hw=HW)

    # TODO(synk): for very large H*W, additionally tile the spatial axis (two-pass /
    # Welford-merged instance-norm stats) so per-sample blocks stay within v7x's 64 MiB VMEM.
    out = pl.pallas_call(
        kernel,
        out_shape=jax.ShapeDtypeStruct((N, 4 * Cout, HW), jnp.float32),
        grid=(N,),
        in_specs=[
            pl.BlockSpec((1, CK, HW), lambda n: (n, 0, 0)),
            pl.BlockSpec((4 * Cout, CK), lambda n: (0, 0)),
            pl.BlockSpec((4 * Cout, 1), lambda n: (0, 0)),
            pl.BlockSpec((4 * Cout, 1), lambda n: (0, 0)),
        ],
        out_specs=pl.BlockSpec((1, 4 * Cout, HW), lambda n: (n, 0, 0)),
        compiler_params=pltpu.CompilerParams(dimension_semantics=("parallel",)),
    )(patches, wsub, g_rows, b_rows)

    # pixel-shuffle: kernel rows are (parity_h, parity_w, co), columns are (i, j)
    out = out.reshape(N, 2, 2, Cout, H, W)
    out = out.transpose(0, 3, 4, 1, 5, 2)                              # (N, Cout, H, 2, W, 2)
    return out.reshape(N, Cout, 2 * H, 2 * W)


def _reference(x, weight, bias, gamma, beta, *, K=4, S=2, P=1):
    """Pure-JAX reference mirroring the PyTorch forward (training-mode InstanceNorm)."""
    wf = jnp.flip(weight, axis=(2, 3)).transpose(1, 0, 2, 3)           # (Cout, Cin, K, K)
    y = lax.conv_general_dilated(
        x, wf, window_strides=(1, 1),
        padding=[(K - 1 - P, K - 1 - P)] * 2,
        lhs_dilation=(S, S),
        dimension_numbers=("NCHW", "OIHW", "NCHW"))
    y = y + bias[None, :, None, None]
    mean = y.mean(axis=(2, 3), keepdims=True)
    var = ((y - mean) ** 2).mean(axis=(2, 3), keepdims=True)
    yn = (y - mean) / jnp.sqrt(var + EPS) * gamma[None, :, None, None] + beta[None, :, None, None]
    return jnp.where(yn > 0, yn, NEG_SLOPE * yn)


if __name__ == "__main__":
    key = jax.random.PRNGKey(0)
    N, Cin, Cout, H, W, K = 2, 4, 8, 16, 16, 4

    k_x, k_w, k_b, k_g, k_be = jax.random.split(key, 5)
    x = jax.random.normal(k_x, (N, Cin, H, W), dtype=jnp.float32)
    weight = jax.random.normal(k_w, (Cin, Cout, K, K), dtype=jnp.float32) * 0.1
    bias = jax.random.normal(k_b, (Cout,), dtype=jnp.float32) * 0.1
    gamma = 1.0 + 0.1 * jax.random.normal(k_g, (Cout,), dtype=jnp.float32)
    beta = 0.1 * jax.random.normal(k_be, (Cout,), dtype=jnp.float32)

    out = upsampling_block(x, weight, bias, gamma, beta)
    out = jax.block_until_ready(out)

    ref = jax.block_until_ready(_reference(x, weight, bias, gamma, beta))
    assert out.shape == (N, Cout, 2 * H, 2 * W), out.shape
    max_err = float(jnp.max(jnp.abs(out - ref)))
    assert jnp.allclose(out, ref, atol=1e-3, rtol=1e-3), max_err

    print("KERNEL_OK")
</pallas_src>

<mosaic_0001>
module attributes {stable_mosaic.version = 11 : i64} {
  func.func @_upsampling_kernel(%arg0: i32, %arg1: memref<1x36x256xf32, #tpu.memory_space<vmem>>, %arg2: memref<32x36xf32, #tpu.memory_space<vmem>>, %arg3: memref<32x1xf32, #tpu.memory_space<vmem>>, %arg4: memref<32x1xf32, #tpu.memory_space<vmem>>, %arg5: memref<1x32x256xf32, #tpu.memory_space<vmem>>) attributes {dimension_semantics = [#tpu.dimension_semantics<parallel>], iteration_bounds = array<i64: 2>, scalar_prefetch = 0 : i64, scratch_operands = 0 : i64, tpu.core_type = #tpu.core_type<tc>, window_params = [{transform_indices = @transform_0, window_bounds = array<i64: 1, 36, 256>}, {pipeline_mode = #tpu.pipeline_mode<synchronous>, transform_indices = @transform_1, window_bounds = array<i64: 32, 36>}, {pipeline_mode = #tpu.pipeline_mode<synchronous>, transform_indices = @transform_2, window_bounds = array<i64: 32, 1>}, {pipeline_mode = #tpu.pipeline_mode<synchronous>, transform_indices = @transform_3, window_bounds = array<i64: 32, 1>}, {transform_indices = @transform_4, window_bounds = array<i64: 1, 32, 256>}]} {
    %c0 = arith.constant 0 : index
    %c0_0 = arith.constant 0 : index
    %c0_1 = arith.constant 0 : index
    %0 = vector.load %arg1[%c0, %c0_0, %c0_1] : memref<1x36x256xf32, #tpu.memory_space<vmem>>, vector<1x36x256xf32>
    %1 = vector.shape_cast %0 : vector<1x36x256xf32> to vector<36x256xf32>
    %c0_2 = arith.constant 0 : index
    %c0_3 = arith.constant 0 : index
    %2 = vector.load %arg2[%c0_2, %c0_3] : memref<32x36xf32, #tpu.memory_space<vmem>>, vector<32x36xf32>
    %cst = arith.constant dense<0.000000e+00> : vector<32x256xf32>
    %3 = tpu.matmul %2, %1, %cst {dimension_numbers = #tpu.dot_dimension_numbers<[1], [0], [0], [1], [0, 0, 1, 1], [], []>} : vector<32x36xf32>, vector<36x256xf32>, vector<32x256xf32> -> vector<32x256xf32>
    %cst_4 = arith.constant dense<0.000000e+00> : vector<32xf32>
    %4 = vector.multi_reduction <add>, %3, %cst_4 [1] : vector<32x256xf32> to vector<32xf32>
    %5 = vector.shape_cast %4 : vector<32xf32> to vector<32x1xf32>
    %6 = vector.extract_strided_slice %5 {offsets = [0, 0], sizes = [8, 1], strides = [1, 1]} : vector<32x1xf32> to vector<8x1xf32>
    %7 = vector.extract_strided_slice %5 {offsets = [8, 0], sizes = [8, 1], strides = [1, 1]} : vector<32x1xf32> to vector<8x1xf32>
    %8 = arith.addf %6, %7 : vector<8x1xf32>
    %9 = vector.extract_strided_slice %5 {offsets = [16, 0], sizes = [8, 1], strides = [1, 1]} : vector<32x1xf32> to vector<8x1xf32>
    %10 = arith.addf %8, %9 : vector<8x1xf32>
    %11 = vector.extract_strided_slice %5 {offsets = [24, 0], sizes = [8, 1], strides = [1, 1]} : vector<32x1xf32> to vector<8x1xf32>
    %12 = arith.addf %10, %11 : vector<8x1xf32>
    %13 = tpu.concatenate %12, %12, %12, %12 in 0 : vector<8x1xf32>, vector<8x1xf32>, vector<8x1xf32>, vector<8x1xf32> -> vector<32x1xf32>
    %cst_5 = arith.constant 9.765625E-4 : f32
    %14 = vector.broadcast %cst_5 : f32 to vector<32x1xf32>
    %15 = arith.mulf %13, %14 : vector<32x1xf32>
    %16 = vector.broadcast %15 : vector<32x1xf32> to vector<32x256xf32>
    %17 = arith.subf %3, %16 : vector<32x256xf32>
    %18 = arith.mulf %17, %17 : vector<32x256xf32>
    %cst_6 = arith.constant dense<0.000000e+00> : vector<32xf32>
    %19 = vector.multi_reduction <add>, %18, %cst_6 [1] : vector<32x256xf32> to vector<32xf32>
    %20 = vector.shape_cast %19 : vector<32xf32> to vector<32x1xf32>
    %21 = vector.extract_strided_slice %20 {offsets = [0, 0], sizes = [8, 1], strides = [1, 1]} : vector<32x1xf32> to vector<8x1xf32>
    %22 = vector.extract_strided_slice %20 {offsets = [8, 0], sizes = [8, 1], strides = [1, 1]} : vector<32x1xf32> to vector<8x1xf32>
    %23 = arith.addf %21, %22 : vector<8x1xf32>
    %24 = vector.extract_strided_slice %20 {offsets = [16, 0], sizes = [8, 1], strides = [1, 1]} : vector<32x1xf32> to vector<8x1xf32>
    %25 = arith.addf %23, %24 : vector<8x1xf32>
    %26 = vector.extract_strided_slice %20 {offsets = [24, 0], sizes = [8, 1], strides = [1, 1]} : vector<32x1xf32> to vector<8x1xf32>
    %27 = arith.addf %25, %26 : vector<8x1xf32>
    %28 = tpu.concatenate %27, %27, %27, %27 in 0 : vector<8x1xf32>, vector<8x1xf32>, vector<8x1xf32>, vector<8x1xf32> -> vector<32x1xf32>
    %cst_7 = arith.constant 9.765625E-4 : f32
    %29 = vector.broadcast %cst_7 : f32 to vector<32x1xf32>
    %30 = arith.mulf %28, %29 : vector<32x1xf32>
    %cst_8 = arith.constant 9.99999974E-6 : f32
    %31 = vector.broadcast %cst_8 : f32 to vector<32x1xf32>
    %32 = arith.addf %30, %31 : vector<32x1xf32>
    %33 = math.rsqrt %32 : vector<32x1xf32>
    %c0_9 = arith.constant 0 : index
    %c0_10 = arith.constant 0 : index
    %34 = vector.load %arg3[%c0_9, %c0_10] : memref<32x1xf32, #tpu.memory_space<vmem>>, vector<32x1xf32>
    %35 = arith.mulf %33, %34 : vector<32x1xf32>
    %36 = vector.broadcast %35 : vector<32x1xf32> to vector<32x256xf32>
    %37 = arith.mulf %17, %36 : vector<32x256xf32>
    %c0_11 = arith.constant 0 : index
    %c0_12 = arith.constant 0 : index
    %38 = vector.load %arg4[%c0_11, %c0_12] : memref<32x1xf32, #tpu.memory_space<vmem>>, vector<32x1xf32>
    %39 = vector.broadcast %38 : vector<32x1xf32> to vector<32x256xf32>
    %40 = arith.addf %37, %39 : vector<32x256xf32>
    %cst_13 = arith.constant 0.000000e+00 : f32
    %41 = vector.broadcast %cst_13 : f32 to vector<32x256xf32>
    %42 = arith.cmpf ogt, %40, %41 : vector<32x256xf32>
    %cst_14 = arith.constant 0.00999999977 : f32
    %43 = vector.broadcast %cst_14 : f32 to vector<32x256xf32>
    %44 = arith.mulf %43, %40 : vector<32x256xf32>
    %45 = arith.select %42, %40, %44 : vector<32x256xi1>, vector<32x256xf32>
    %c0_15 = arith.constant 0 : index
    %c0_16 = arith.constant 0 : index
    %c0_17 = arith.constant 0 : index
    %46 = vector.load %arg5[%c0_15, %c0_16, %c0_17] : memref<1x32x256xf32, #tpu.memory_space<vmem>>, vector<1x32x256xf32>
    %47 = vector.shape_cast %46 : vector<1x32x256xf32> to vector<32x256xf32>
    %48 = vector.shape_cast %45 : vector<32x256xf32> to vector<1x32x256xf32>
    tpu.vector_store %arg5[%c0_15, %c0_16, %c0_17], %48 {strides = array<i32>} : memref<1x32x256xf32, #tpu.memory_space<vmem>>, vector<1x32x256xf32>,
    return
  }
  func.func @transform_0(%arg0: i32) -> (i32, i32, i32) {
    %c0_i32 = arith.constant 0 : i32
    %c0_i32_0 = arith.constant 0 : i32
    %c0_i32_1 = arith.constant 0 : i32
    return %arg0, %c0_i32, %c0_i32_0 : i32, i32, i32
  }
  func.func @transform_1(%arg0: i32) -> (i32, i32) {
    %c0_i32 = arith.constant 0 : i32
    %c0_i32_0 = arith.constant 0 : i32
    %c0_i32_1 = arith.constant 0 : i32
    return %c0_i32, %c0_i32_0 : i32, i32
  }
  func.func @transform_2(%arg0: i32) -> (i32, i32) {
    %c0_i32 = arith.constant 0 : i32
    %c0_i32_0 = arith.constant 0 : i32
    %c0_i32_1 = arith.constant 0 : i32
    return %c0_i32, %c0_i32_0 : i32, i32
  }
  func.func @transform_3(%arg0: i32) -> (i32, i32) {
    %c0_i32 = arith.constant 0 : i32
    %c0_i32_0 = arith.constant 0 : i32
    %c0_i32_1 = arith.constant 0 : i32
    return %c0_i32, %c0_i32_0 : i32, i32
  }
  func.func @transform_4(%arg0: i32) -> (i32, i32, i32) {
    %c0_i32 = arith.constant 0 : i32
    %c0_i32_0 = arith.constant 0 : i32
    %c0_i32_1 = arith.constant 0 : i32
    return %arg0, %c0_i32, %c0_i32_0 : i32, i32, i32
  }
}

</mosaic_0001>

<llo_original>
// kernel: tpu_custom_call.1
$region0: #{tpu_custom_call.1}
  #allocation0 [shape = 'u32[]', space=smem, size = 0x4, offset = 0x4, fixed_abs, tag = 'smem constant byte address 0x4 - core index']
  #allocation1 [shape = 'u32[144,128]{1,0:T(1,128)}', space=vmem, size = 0x12000, scoped, tag = 'internal scratch']
  %s0 = inlined_call_operand.vmem [shape: f32[2,36,256], index: 0, kind: input, shape index: {}]
  %s1 = inlined_call_operand.vmem [shape: f32[32,36], index: 1, kind: input, shape index: {}]
  %s2 = inlined_call_operand.vmem [shape: f32[32,1], index: 2, kind: input, shape index: {}]
  %s3 = inlined_call_operand.vmem [shape: f32[32,1], index: 3, kind: input, shape index: {}]
  %s4 = inlined_call_operand.hbm [shape: f32[2,32,256], index: 4, kind: output, shape index: {}]
  %s5 = sld [smem:[#allocation0]]
  $region49: #{tpu_custom_call.1} parent=0
    _
  %s7 = ssub.s32 1, %s5
  %s8 = scalar_select 0, %s7, %s5
  $region1: #{tpu_custom_call.1} parent=0
    #allocation2 [shape = 'u8[65536]{0}', space=vmem, size = 0x10000, scoped, tag = 'output window, operand 0']
    #allocation3 [shape = 's32[2]{0}', space=sflag, size = 0x8, scoped, tag = 'scoped memory for tpu_custom_call.1']
    %9 = vsyncpa [#allocation3], 0
    %s10 = scalar_lea.sflag [#allocation3], 1
    %11 = vsyncpa %s10, 0
    loop: start=0, step=1, limit=4
    $region2: #{tpu_custom_call.1} parent=1 // loop_pre_header
      _
    $region3: #{tpu_custom_call.1} parent=1 // loop_header
      %s13 = sphi 0, %s17
      %p14 = scmp.ge.s32.totalorder %s13, 4
      %s23 = sphi 0, %s25
      %s26 = sphi 0, %s23
      %s27 = sphi 0, %s26
      %s43 = sphi 0, %s27
      %s47 = sphi 0, %s47
      %s49 = sphi 0, %s47
      %s50 = sphi 0, %s49
      %s64 = sphi 0, %s50
      %s68 = sphi 0, %s68
      %s70 = sphi 0, %s68
      %s71 = sphi 0, %s70
      %s85 = sphi 0, %s71
      %s89 = sphi 0, %s89
      %s91 = sphi 0, %s89
      %s92 = sphi 0, %s91
      %s106 = sphi 0, %s92
      %s112 = sphi 0, %s114
      %s115 = sphi 0, %s112
      %s116 = sphi 0, %s115
      %s132 = sphi 0, %s116
    $region4: #{tpu_custom_call.1} parent=1 // loop_header_branch
      %16 = sbr.rel (%p14) target = $region8
    $region5: #{tpu_custom_call.1} parent=1 // loop_body
      %s18 = ssub.s32 %s13, 1
      %s19 = ssub.s32 %s13, 2
      %s20 = sadd.s32 %s13, 1
      %s21 = ssub.s32 %s13, %s20
      %p22 = scmp.eq.s32.totalorder %s21, 0
      %s24 = sadd.s32 %s23, 1
      %s25 = scalar_select %p22, %s23, %s24
      %p28 = pneg %p22
      %p29 = scmp.eq.s32.totalorder %s13, 1
      %p30 = por %p28, %p29
      %p31 = scmp.ne.s32.totalorder %s23, %s26
      %p32 = scmp.eq.s32.totalorder %s13, 0
      %p33 = por %p31, %p32
      %p34 = scmp.ne.s32.totalorder %s23, %s26
      %p35 = scmp.eq.s32.totalorder %s18, 1
      %p36 = por %p34, %p35
      %p37 = scmp.ne.s32.totalorder %s26, %s27
      %p38 = scmp.eq.s32.totalorder %s18, 0
      %p39 = por %p37, %p38
      %p40 = scmp.ne.s32.totalorder %s26, %s27
      %p41 = scmp.eq.s32.totalorder %s19, 1
      %p42 = por %p40, %p41
      %p44 = scmp.ne.s32.totalorder %s27, %s43
      %p45 = scmp.eq.s32.totalorder %s19, 0
      %p46 = por %p44, %p45
      %s48 = sadd.s32 %s47, 1
      %p51 = scmp.eq.s32.totalorder %s13, 1
      %p52 = scmp.ne.s32.totalorder %s47, %s49
      %p53 = scmp.eq.s32.totalorder %s13, 0
      %p54 = por %p52, %p53
      %p55 = scmp.ne.s32.totalorder %s47, %s49
      %p56 = scmp.eq.s32.totalorder %s18, 1
      %p57 = por %p55, %p56
      %p58 = scmp.ne.s32.totalorder %s49, %s50
      %p59 = scmp.eq.s32.totalorder %s18, 0
      %p60 = por %p58, %p59
      %p61 = scmp.ne.s32.totalorder %s49, %s50
      %p62 = scmp.eq.s32.totalorder %s19, 1
      %p63 = por %p61, %p62
      %p65 = scmp.ne.s32.totalorder %s50, %s64
      %p66 = scmp.eq.s32.totalorder %s19, 0
      %p67 = por %p65, %p66
      %s69 = sadd.s32 %s68, 1
      %p72 = scmp.eq.s32.totalorder %s13, 1
      %p73 = scmp.ne.s32.totalorder %s68, %s70
      %p74 = scmp.eq.s32.totalorder %s13, 0
      %p75 = por %p73, %p74
      %p76 = scmp.ne.s32.totalorder %s68, %s70
      %p77 = scmp.eq.s32.totalorder %s18, 1
      %p78 = por %p76, %p77
      %p79 = scmp.ne.s32.totalorder %s70, %s71
      %p80 = scmp.eq.s32.totalorder %s18, 0
      %p81 = por %p79, %p80
      %p82 = scmp.ne.s32.totalorder %s70, %s71
      %p83 = scmp.eq.s32.totalorder %s19, 1
      %p84 = por %p82, %p83
      %p86 = scmp.ne.s32.totalorder %s71, %s85
      %p87 = scmp.eq.s32.totalorder %s19, 0
      %p88 = por %p86, %p87
      %s90 = sadd.s32 %s89, 1
      %p93 = scmp.eq.s32.totalorder %s13, 1
      %p94 = scmp.ne.s32.totalorder %s89, %s91
      %p95 = scmp.eq.s32.totalorder %s13, 0
      %p96 = por %p94, %p95
      %p97 = scmp.ne.s32.totalorder %s89, %s91
      %p98 = scmp.eq.s32.totalorder %s18, 1
      %p99 = por %p97, %p98
      %p100 = scmp.ne.s32.totalorder %s91, %s92
      %p101 = scmp.eq.s32.totalorder %s18, 0
      %p102 = por %p100, %p101
      %p103 = scmp.ne.s32.totalorder %s91, %s92
      %p104 = scmp.eq.s32.totalorder %s19, 1
      %p105 = por %p103, %p104
      %p107 = scmp.ne.s32.totalorder %s92, %s106
      %p108 = scmp.eq.s32.totalorder %s19, 0
      %p109 = por %p107, %p108
      %s110 = ssub.s32 %s13, %s20
      %p111 = scmp.eq.s32.totalorder %s110, 0
      %s113 = sadd.s32 %s112, 1
      %s114 = scalar_select %p111, %s112, %s113
      %p117 = pneg %p111
      %p118 = scmp.eq.s32.totalorder %s13, 1
      %p119 = por %p117, %p118
      %p120 = scmp.ne.s32.totalorder %s112, %s115
      %p121 = scmp.eq.s32.totalorder %s13, 0
      %p122 = por %p120, %p121
      %p123 = scmp.ne.s32.totalorder %s112, %s115
      %p124 = scmp.eq.s32.totalorder %s18, 1
      %p125 = por %p123, %p124
      %p126 = scmp.ne.s32.totalorder %s115, %s116
      %p127 = scmp.eq.s32.totalorder %s18, 0
      %p128 = por %p126, %p127
      %p129 = scmp.ne.s32.totalorder %s115, %s116
      %p130 = scmp.eq.s32.totalorder %s19, 1
      %p131 = por %p129, %p130
      %p133 = scmp.ne.s32.totalorder %s116, %s132
      %p134 = scmp.eq.s32.totalorder %s19, 0
      %p135 = por %p133, %p134
      %p136 = scmp.le.s32.totalorder 1, %s13
      %p137 = scmp.lt.s32.totalorder %s13, 3
      %p138 = pnand %p136, %p137
      %p139 = pneg %p138
      // Predicated region
      $region9: #{tpu_custom_call.1} parent=5 // pred_check
        _
      $region10: #{tpu_custom_call.1} parent=5 // pred_check_branch
        %141 = sbr.rel (%p138) target = $region12
      $region11: #{tpu_custom_call.1} parent=5 // pred_region
        %s142 = ssub.s32 %s13, 1
        // Predicated region
        $region13: #{tpu_custom_call.1} parent=11 // pred_check
          %p143 = pneg %p60
        $region14: #{tpu_custom_call.1} parent=11 // pred_check_branch
          %145 = sbr.rel (%p143) target = $region16
        $region15: #{tpu_custom_call.1} parent=11 // pred_region
          _
        $region16: #{tpu_custom_call.1} parent=11 // pred_fallthru
          _
        // Predicated region
        $region17: #{tpu_custom_call.1} parent=11 // pred_check
          %p146 = pneg %p81
        $region18: #{tpu_custom_call.1} parent=11 // pred_check_branch
          %148 = sbr.rel (%p146) target = $region20
        $region19: #{tpu_custom_call.1} parent=11 // pred_region
          _
        $region20: #{tpu_custom_call.1} parent=11 // pred_fallthru
          _
        // Predicated region
        $region21: #{tpu_custom_call.1} parent=11 // pred_check
          %p149 = pneg %p102
        $region22: #{tpu_custom_call.1} parent=11 // pred_check_branch
          %151 = sbr.rel (%p149) target = $region24
        $region23: #{tpu_custom_call.1} parent=11 // pred_region
          _
        $region24: #{tpu_custom_call.1} parent=11 // pred_fallthru
          _
      $region12: #{tpu_custom_call.1} parent=5 // pred_fallthru
        _
      %p152 = scmp.lt.s32.totalorder %s13, 2
      // Predicated region
      $region25: #{tpu_custom_call.1} parent=5 // pred_check
        %p153 = pneg %p152
      $region26: #{tpu_custom_call.1} parent=5 // pred_check_branch
        %155 = sbr.rel (%p153) target = $region28
      $region27: #{tpu_custom_call.1} parent=5 // pred_region
        // Predicated region
        $region29: #{tpu_custom_call.1} parent=27 // pred_check
          %p156 = pneg %p33
        $region30: #{tpu_custom_call.1} parent=27 // pred_check_branch
          %158 = sbr.rel (%p156) target = $region32
        $region31: #{tpu_custom_call.1} parent=27 // pred_region
          %p159 = scmp.lt.s32.totalorder %s13, 1
          %s160 = scalar_select %p159, %s13, 1
          %s161 = smul.addr %s160, 10
          %s162 = smul.addr %s161, 8
          %s163 = scalar_lea.vmem %s0, %s162
        $region32: #{tpu_custom_call.1} parent=27 // pred_fallthru
          _
      $region28: #{tpu_custom_call.1} parent=5 // pred_fallthru
        _
      %p164 = scmp.le.s32.totalorder 1, %s13
      %p165 = scmp.lt.s32.totalorder %s13, 3
      %p166 = pnand %p164, %p165
      %p167 = pneg %p166
      // Predicated region
      $region33: #{tpu_custom_call.1} parent=5 // pred_check
        _
      $region34: #{tpu_custom_call.1} parent=5 // pred_check_branch
        %169 = sbr.rel (%p166) target = $region36
      $region35: #{tpu_custom_call.1} parent=5 // pred_region
        %s170 = ssub.s32 %s13, 1
        %p171 = scmp.lt.s32.totalorder %s18, 1
        %s172 = scalar_select %p171, %s18, 1
        %s173 = smul.addr %s172, 10
        %s174 = smul.addr %s173, 8
        %s175 = scalar_lea.vmem %s0, %s174
        %p176 = pneg %p39
        %p177 = pneg %p36
        %p178 = pneg %p60
        %p179 = pneg %p57
        %p180 = pneg %p81
        %p181 = pneg %p78
        %p182 = pneg %p102
        %p183 = pneg %p99
        %p184 = pneg %p128
        %p185 = pneg %p125
        %s186 = sand.u32 %s115, 1
        %s187 = scalar_lea.sflag [#allocation3], %s186
        %s188 = sand.u32 %s115, 1
        %s189 = smul.addr %s188, 64
        %s190 = scalar_lea.vmem [#allocation2], %s189
        %p191 = scmp.lt.s32.totalorder %s18, 1
        %s192 = scalar_select %p191, %s18, 1
        %s193 = smul.addr %s192, 10
        %s194 = smul.addr %s193, 8
        %s195 = scalar_lea.vmem %s0, %s194
        %v196 = vld [vmem:[%s195] sm:$0xff]
        %v197 = vld [vmem:[%s195 + $0x8] sm:$0xff]
        %v198 = vld [vmem:[%s195 + $0x10] sm:$0xff]
        %v199 = vld [vmem:[%s195 + $0x18] sm:$0xff]
        %v200 = vld [vmem:[%s195 + $0x20] sm:$0xff]
        %v201 = vld [vmem:[%s195 + $0x28] sm:$0xff]
        %v202 = vld [vmem:[%s195 + $0x30] sm:$0xff]
        %v203 = vld [vmem:[%s195 + $0x38] sm:$0xff]
        %v204 = vld [vmem:[%s195 + $0x40] sm:$0xf]
        %v205 = vld [vmem:[%s195 + $0x48] sm:$0xf]
        %v206 = vld [vmem:[%s1] sm:$0xff]
        %v207 = vld [vmem:[%s1 + $0x8] sm:$0xff]
        %v208 = vld [vmem:[%s1 + $0x10] sm:$0xff]
        %v209 = vld [vmem:[%s1 + $0x18] sm:$0xff]
        %vm210 = vcmask 293888
        %v212 = vsel %vm210, %v206, 0
        %v215 = vsel %vm210, %v207, 0
        %v218 = vsel %vm210, %v208, 0
        %v221 = vsel %vm210, %v209, 0
        %vm223 = vcmask 1043456
        %v225 = vsel %vm223, %v204, 0
        %v228 = vsel %vm223, %v205, 0
        %230 = vmatprep.subr.mxu0 0.0
        %231 = vmatpush1.msra.mxu0 0.0
        %232 = vmatprep.subr.mxu0 0.0
        %233 = vmatpush1.msra.mxu0 0.0
        %234 = vmatprep.subr.mxu0 0.0
        %235 = vmatpush1.msra.mxu0 0.0
        %236 = vmatprep.subr.mxu0 0.0
        %237 = vmatpush1.msra.mxu0 0.0
        %238 = vmatprep.subr.mxu0 0.0
        %239 = vmatpush1.msra.mxu0 0.0
        %240 = vmatprep.subr.mxu0 0.0
        %241 = vmatpush1.msra.mxu0 0.0
        %242 = vmatprep.subr.mxu0 0.0
        %243 = vmatpush1.msra.mxu0 0.0
        %244 = vmatprep.subr.mxu0 0.0
        %245 = vmatpush1.msra.mxu0 0.0
        %246 = vmatprep.subr.mxu0 0.0
        %247 = vmatpush1.msra.mxu0 0.0
        %248 = vmatprep.subr.mxu0 0.0
        %249 = vmatpush1.msra.mxu0 0.0
        %250 = vmatprep.subr.mxu0 0.0
        %251 = vmatpush1.msra.mxu0 0.0
        %252 = vmatprep.subr.mxu0 %v228
        %253 = vmatpush1.msra.mxu0 %v225
        %254 = vmatprep.subr.mxu0 %v203
        %255 = vmatpush1.msra.mxu0 %v202
        %256 = vmatprep.subr.mxu0 %v201
        %257 = vmatpush1.msra.mxu0 %v200
        %258 = vmatprep.subr.mxu0 %v199
        %259 = vmatpush1.msra.mxu0 %v198
        %260 = vmatprep.subr.mxu0 %v197
        %261 = vmatpush1.msra.mxu0 %v196
        %262 = vmatprep.subr.mxu0 0.0
        %263 = vmatpush2.msra.mxu0 0.0
        %264 = vmatprep.subr.mxu0 0.0
        %265 = vmatpush2.msra.mxu0 0.0
        %266 = vmatprep.subr.mxu0 0.0
        %267 = vmatpush2.msra.mxu0 0.0
        %268 = vmatprep.subr.mxu0 0.0
        %269 = vmatpush2.msra.mxu0 0.0
        %270 = vmatprep.subr.mxu0 0.0
        %271 = vmatpush2.msra.mxu0 0.0
        %272 = vmatprep.subr.mxu0 0.0
        %273 = vmatpush2.msra.mxu0 0.0
        %274 = vmatprep.subr.mxu0 0.0
        %275 = vmatpush2.msra.mxu0 0.0
        %276 = vmatprep.subr.mxu0 0.0
        %277 = vmatpush2.msra.mxu0 0.0
        %278 = vmatprep.subr.mxu0 0.0
        %279 = vmatpush2.msra.mxu0 0.0
        %280 = vmatprep.subr.mxu0 0.0
        %281 = vmatpush2.msra.mxu0 0.0
        %282 = vmatprep.subr.mxu0 0.0
        %283 = vmatpush2.msra.mxu0 0.0
        %284 = vmatprep.subr.mxu0 0.0
        %285 = vmatpush2.msra.mxu0 0.0
        %286 = vmatprep.subr.mxu0 0.0
        %287 = vmatpush2.msra.mxu0 0.0
        %288 = vmatprep.subr.mxu0 0.0
        %289 = vmatpush2.msra.mxu0 0.0
        %290 = vmatprep.subr.mxu0 0.0
        %291 = vmatpush2.msra.mxu0 0.0
        %292 = vmatprep.subr.mxu0 0.0
        %293 = vmatpush2.msra.mxu0 0.0
        %294 = vmatprep.mubr.f32.mxu0 0.0
        %295 = vmatmul.mubr.f32.gmra.mxu0 %v212
        %v296 = vpop.f32.mrf.mxu0
        %v297 = vadd.f32 0.0, %v296
        %v298 = vpop.f32.mrf.mxu0
        %v299 = vadd.f32 0.0, %v298
        %300 = vmatprep.mubr.f32.mxu0 0.0
        %301 = vmatmul.mubr.f32.gmra.mxu0 %v215
        %v302 = vpop.f32.mrf.mxu0
        %v303 = vadd.f32 0.0, %v302
        %v304 = vpop.f32.mrf.mxu0
        %v305 = vadd.f32 0.0, %v304
        %306 = vmatprep.mubr.f32.mxu0 0.0
        %307 = vmatmul.mubr.f32.gmra.mxu0 %v218
        %v308 = vpop.f32.mrf.mxu0
        %v309 = vadd.f32 0.0, %v308
        %v310 = vpop.f32.mrf.mxu0
        %v311 = vadd.f32 0.0, %v310
        %312 = vmatprep.mubr.f32.mxu0 0.0
        %313 = vmatmul.mubr.f32.gmra.mxu0 %v221
        %v314 = vpop.f32.mrf.mxu0
        %v315 = vadd.f32 0.0, %v314
        %v316 = vpop.f32.mrf.mxu0
        %v317 = vadd.f32 0.0, %v316
        %318 = vdwg.mxu0
        %v319 = vadd.f32 %v297, %v299
        %320 = vadd.xlane.f32.xlu0 %v319
        %v321 = vpop.xlane.xlu0 %320
        %v322 = vadd.f32 %v303, %v305
        %323 = vadd.xlane.f32.xlu0 %v322
        %v324 = vpop.xlane.xlu0 %323
        %v325 = vadd.f32 %v309, %v311
        %326 = vadd.xlane.f32.xlu0 %v325
        %v327 = vpop.xlane.xlu0 %326
        %v328 = vadd.f32 %v315, %v317
        %329 = vadd.xlane.f32.xlu0 %v328
        %v330 = vpop.xlane.xlu0 %329
        %v331 = vadd.f32 %v321, %v324
        %v332 = vadd.f32 %v331, %v327
        %v333 = vadd.f32 %v332, %v330
        %v334 = vmul.f32 %v333, 0.0009765625
        %336 = vset.pattern.permute.xlu0 0
        %337 = vperm.xlu0 %336, %v334
        %v338 = vpop.permute.xlu0 %337
        %v340 = vsub.f32 %v297, %v338
        %v341 = vsub.f32 %v299, %v338
        %v342 = vsub.f32 %v303, %v338
        %v343 = vsub.f32 %v305, %v338
        %v344 = vsub.f32 %v309, %v338
        %v345 = vsub.f32 %v311, %v338
        %v346 = vsub.f32 %v315, %v338
        %v347 = vsub.f32 %v317, %v338
        %v348 = vmul.f32 %v340, %v340
        %v349 = vmul.f32 %v341, %v341
        %v350 = vmul.f32 %v342, %v342
        %v351 = vmul.f32 %v343, %v343
        %v352 = vmul.f32 %v344, %v344
        %v353 = vmul.f32 %v345, %v345
        %v354 = vmul.f32 %v346, %v346
        %v355 = vmul.f32 %v347, %v347
        %v356 = vadd.f32 %v348, %v349
        %357 = vadd.xlane.f32.xlu0 %v356
        %v358 = vpop.xlane.xlu0 %357
        %v359 = vadd.f32 %v350, %v351
        %360 = vadd.xlane.f32.xlu0 %v359
        %v361 = vpop.xlane.xlu0 %360
        %v362 = vadd.f32 %v352, %v353
        %363 = vadd.xlane.f32.xlu0 %v362
        %v364 = vpop.xlane.xlu0 %363
        %v365 = vadd.f32 %v354, %v355
        %366 = vadd.xlane.f32.xlu0 %v365
        %v367 = vpop.xlane.xlu0 %366
        %v368 = vadd.f32 %v358, %v361
        %v369 = vadd.f32 %v368, %v364
        %v370 = vadd.f32 %v369, %v367
        %v371 = vmul.f32 %v370, 0.0009765625
        %v372 = vadd.f32 %v371, 1e-05
        %v373 = vrsqrt.pop %v372
        %v374 = vld [vmem:[%s2] sm:$0xff]
        %v375 = vld [vmem:[%s2 + $0x8] sm:$0xff]
        %v376 = vld [vmem:[%s2 + $0x10] sm:$0xff]
        %v377 = vld [vmem:[%s2 + $0x18] sm:$0xff]
        %v378 = vmul.f32 %v373, %v374
        %v379 = vmul.f32 %v373, %v375
        %v380 = vmul.f32 %v373, %v376
        %v381 = vmul.f32 %v373, %v377
        %383 = vset.pattern.permute.xlu0 0
        %384 = vperm.xlu0 %383, %v378
        %v385 = vpop.permute.xlu0 %384
        %388 = vset.pattern.permute.xlu0 0
        %389 = vperm.xlu0 %388, %v379
        %v390 = vpop.permute.xlu0 %389
        %393 = vset.pattern.permute.xlu0 0
        %394 = vperm.xlu0 %393, %v380
        %v395 = vpop.permute.xlu0 %394
        %398 = vset.pattern.permute.xlu0 0
        %399 = vperm.xlu0 %398, %v381
        %v400 = vpop.permute.xlu0 %399
        %v402 = vmul.f32 %v340, %v385
        %v403 = vmul.f32 %v341, %v385
        %v404 = vmul.f32 %v342, %v390
        %v405 = vmul.f32 %v343, %v390
        %v406 = vmul.f32 %v344, %v395
        %v407 = vmul.f32 %v345, %v395
        %v408 = vmul.f32 %v346, %v400
        %v409 = vmul.f32 %v347, %v400
        %v410 = vld [vmem:[%s3] sm:$0xff]
        %v411 = vld [vmem:[%s3 + $0x8] sm:$0xff]
        %v412 = vld [vmem:[%s3 + $0x10] sm:$0xff]
        %v413 = vld [vmem:[%s3 + $0x18] sm:$0xff]
        %415 = vset.pattern.permute.xlu0 0
        %416 = vperm.xlu0 %415, %v410
        %v417 = vpop.permute.xlu0 %416
        %420 = vset.pattern.permute.xlu0 0
        %421 = vperm.xlu0 %420, %v411
        %v422 = vpop.permute.xlu0 %421
        %425 = vset.pattern.permute.xlu0 0
        %426 = vperm.xlu0 %425, %v412
        %v427 = vpop.permute.xlu0 %426
        %430 = vset.pattern.permute.xlu0 0
        %431 = vperm.xlu0 %430, %v413
        %v432 = vpop.permute.xlu0 %431
        %v434 = vadd.f32 %v402, %v417
        %v435 = vadd.f32 %v403, %v417
        %v436 = vadd.f32 %v404, %v422
        %v437 = vadd.f32 %v405, %v422
        %v438 = vadd.f32 %v406, %v427
        %v439 = vadd.f32 %v407, %v427
        %v440 = vadd.f32 %v408, %v432
        %v441 = vadd.f32 %v409, %v432
        %vm442 = vcmp.gt.f32.partialorder %v434, 0.0
        %vm443 = vcmp.gt.f32.partialorder %v435, 0.0
        %vm444 = vcmp.gt.f32.partialorder %v436, 0.0
        %vm445 = vcmp.gt.f32.partialorder %v437, 0.0
        %vm446 = vcmp.gt.f32.partialorder %v438, 0.0
        %vm447 = vcmp.gt.f32.partialorder %v439, 0.0
        %vm448 = vcmp.gt.f32.partialorder %v440, 0.0
        %vm449 = vcmp.gt.f32.partialorder %v441, 0.0
        %v450 = vmul.f32 %v434, 0.01
        %v451 = vmul.f32 %v435, 0.01
        %v452 = vmul.f32 %v436, 0.01
        %v453 = vmul.f32 %v437, 0.01
        %v454 = vmul.f32 %v438, 0.01
        %v455 = vmul.f32 %v439, 0.01
        %v456 = vmul.f32 %v440, 0.01
        %v457 = vmul.f32 %v441, 0.01
        %v458 = vsel %vm442, %v434, %v450
        %v459 = vsel %vm443, %v435, %v451
        %v460 = vsel %vm444, %v436, %v452
        %v461 = vsel %vm445, %v437, %v453
        %v462 = vsel %vm446, %v438, %v454
        %v463 = vsel %vm447, %v439, %v455
        %v464 = vsel %vm448, %v440, %v456
        %v465 = vsel %vm449, %v441, %v457
        %466 = vst [vmem:[%s190] sm:$0xff] %v458
        %467 = vst [vmem:[%s190 + $0x8] sm:$0xff] %v459
        %468 = vst [vmem:[%s190 + $0x10] sm:$0xff] %v460
        %469 = vst [vmem:[%s190 + $0x18] sm:$0xff] %v461
        %470 = vst [vmem:[%s190 + $0x20] sm:$0xff] %v462
        %471 = vst [vmem:[%s190 + $0x28] sm:$0xff] %v463
        %472 = vst [vmem:[%s190 + $0x30] sm:$0xff] %v464
        %473 = vst [vmem:[%s190 + $0x38] sm:$0xff] %v465
        %s474 = sand.u32 %s115, 1
        %s475 = scalar_lea.sflag [#allocation3], %s474
        %s476 = sand.u32 %s115, 1
        %s477 = smul.addr %s476, 64
        %s478 = scalar_lea.vmem [#allocation2], %s477
        // Predicated region
        $region37: #{tpu_custom_call.1} parent=35 // pred_check
          %p479 = pneg %p125
        $region38: #{tpu_custom_call.1} parent=35 // pred_check_branch
          %481 = sbr.rel (%p479) target = $region40
        $region39: #{tpu_custom_call.1} parent=35 // pred_region
          %s483 = ssub.s32 1024, 1024
          %484 = vsyncadd %s475, %s483
          %s485 = smul.addr %s18, 8
          %s486 = smul.addr %s485, 128
          %s487 = scalar_lea.hbm %s4, %s486
          %s488 = sshll.u32 %s478, 4
          %s489 = int_to_ptr.vmem [resolvable:$true] %s488
          %494 = dma.vmem_to_hbm [thread:$0]  %s489, 1024, %s487, %s475, 256, 256, 16
        $region40: #{tpu_custom_call.1} parent=35 // pred_fallthru
          _
      $region36: #{tpu_custom_call.1} parent=5 // pred_fallthru
        _
      %p495 = scmp.le.s32.totalorder 2, %s13
      // Predicated region
      $region41: #{tpu_custom_call.1} parent=5 // pred_check
        %p496 = pneg %p495
      $region42: #{tpu_custom_call.1} parent=5 // pred_check_branch
        %498 = sbr.rel (%p496) target = $region44
      $region43: #{tpu_custom_call.1} parent=5 // pred_region
        %s499 = ssub.s32 %s13, 2
        // Predicated region
        $region45: #{tpu_custom_call.1} parent=43 // pred_check
          %p500 = pneg %p131
        $region46: #{tpu_custom_call.1} parent=43 // pred_check_branch
          %502 = sbr.rel (%p500) target = $region48
        $region47: #{tpu_custom_call.1} parent=43 // pred_region
          %s503 = sand.u32 %s116, 1
          %s504 = scalar_lea.sflag [#allocation3], %s503
          %s505 = sand.u32 %s116, 1
          %s506 = smul.addr %s505, 64
          %s507 = scalar_lea.vmem [#allocation2], %s506
          %508 = dma.done %s504, 1024
        $region48: #{tpu_custom_call.1} parent=43 // pred_fallthru
          _
      $region44: #{tpu_custom_call.1} parent=5 // pred_fallthru
        _
    $region6: #{tpu_custom_call.1} parent=1 // loop_footer
      %s17 = sadd.s32 1, %s13
    $region7: #{tpu_custom_call.1} parent=1 // loop_footer_branch
      %12 = sbr.rel target = $region3
    $region8: #{tpu_custom_call.1} parent=1 // loop_exit
      _
    %509 = vsyncpa [#allocation3], 1
    %s510 = scalar_lea.sflag [#allocation3], 1
    %511 = vsyncpa %s510, 1

</llo_original>
